<compile_context>
chip_gen: v5e
topology: v5e:2x2
jax: 0.10.0
libtpu: 0.0.40
codegen_flags: <defaults>
</compile_context>

<pallas_src>
import jax
import jax.numpy as jnp
from jax.experimental import pallas as pl
from jax.experimental.pallas import tpu as pltpu

PACK = 8          # rows of x packed per lane-dense row: 8 * 16 = 128 lanes
K_IN = 16         # nn.Linear(16, 32)
N_OUT = 32
KP = PACK * K_IN  # 128  (packed contraction depth = full vreg lane width)
NP = PACK * N_OUT  # 256 (packed output width, lane-dense multiple of 128)

MIN_ROWS_FOR_PALLAS = 1024  # below this, XLA wins on launch overhead alone


def _packed_linear_kernel(x_ref, w_ref, b_ref, o_ref):
    # (TM, 128) @ (128, 256) on the MXU with f32 accumulation, fused bias add.
    acc = jnp.dot(x_ref[...], w_ref[...], preferred_element_type=jnp.float32)
    o_ref[...] = (acc + b_ref[...]).astype(o_ref.dtype)


def _choose_packed_tile(mp, *, max_tile=1024, min_tile=128, target_steps=4):
    """Tile size (in packed rows) for the M axis.

    - single tile only when the whole input is at most one "minimum" tile,
    - otherwise aim for >= target_steps grid steps (megacore sharding on v7x)
      while keeping tiles >= min_tile rows to amortize the ~0.35 us/step cost,
    - cap at max_tile so double-buffered tiles stay ~3 MiB of VMEM.
    """
    if mp <= min_tile:
        return mp  # block second-to-last dim == full array dim: (8,128) rule OK
    t = pl.cdiv(mp, target_steps)
    t = max(min_tile, min(t, max_tile))
    t = ((t + 7) // 8) * 8  # sublane multiple
    return min(t, mp)


def linear_packed_pallas(xp, w_bd, b_tiled):
    """out = xp @ w_bd + b_tiled with xp:(Mp,128), w_bd:(128,256), b:(1,256)."""
    mp, kp = xp.shape
    np_ = w_bd.shape[1]
    tm_p = _choose_packed_tile(mp)
    grid = (pl.cdiv(mp, tm_p),)
    out_shape = jax.ShapeDtypeStruct((mp, np_), xp.dtype)

    def build(single_buffer_consts):
        # Weight/bias index maps are grid-invariant; single-buffer them to skip
        # the redundant second prologue DMA + VMEM copy.
        const_mode = (
            {"pipeline_mode": pl.Buffered(1)} if single_buffer_consts else {}
        )
        return pl.pallas_call(
            _packed_linear_kernel,
            out_shape=out_shape,
            grid=grid,
            in_specs=[
                pl.BlockSpec((tm_p, kp), lambda i: (i, 0)),              # x: tiled over rows
                pl.BlockSpec((kp, np_), lambda i: (0, 0), **const_mode),  # packed weights
                pl.BlockSpec((1, np_), lambda i: (0, 0), **const_mode),   # packed bias
            ],
            out_specs=pl.BlockSpec((tm_p, np_), lambda i: (i, 0)),
            compiler_params=pltpu.CompilerParams(
                # Row tiles are independent work -> shard grid steps across both
                # TensorCores on v7x (no effect on single-TC v5e/v6e).
                dimension_semantics=("parallel",),
            ),
        )

    try:
        return build(True)(xp, w_bd, b_tiled)
    except Exception:
        # pl.Buffered(1) not supported by this jax build: use default buffering.
        return build(False)(xp, w_bd, b_tiled)


def linear_layers(params, x2d, *, force_pallas=False):
    """y = x2d @ W.T + b for the nn.Linear(16, 32) layer."""
    m = x2d.shape[0]
    if not force_pallas and m < MIN_ROWS_FOR_PALLAS:
        # Tiny matmul: pallas_call fixed cost (launch + pipeline prologue)
        # dwarfs <0.1 us of work; let XLA do (and fuse) it.
        return x2d @ params["layers_w"].T + params["layers_b"]

    m_pad = ((m + PACK - 1) // PACK) * PACK
    if m_pad != m:
        # Zero rows just produce bias-only rows that are sliced off below.
        x2d = jnp.pad(x2d, ((0, m_pad - m), (0, 0)))
    xp = x2d.reshape(m_pad // PACK, KP)  # free row-major reshape, lane-dense
    out_p = linear_packed_pallas(xp, params["layers_w_bd"], params["layers_b_tiled"])
    out = out_p.reshape(m_pad, N_OUT)    # bit-exact un-packing, no column slice
    if m_pad != m:
        out = out[:m]
    return out


def init_params(key):
    """PyTorch-Linear-style init (uniform +-1/sqrt(fan_in)); packs the kernel
    weights once at init (block-diagonal (128,256) + tiled bias)."""

    def lin(k, out_f, in_f):
        kw, kb = jax.random.split(k)
        bound = 1.0 / float(in_f) ** 0.5
        w = jax.random.uniform(kw, (out_f, in_f), jnp.float32, -bound, bound)
        b = jax.random.uniform(kb, (out_f,), jnp.float32, -bound, bound)
        return w, b

    k0, k1, k2 = jax.random.split(key, 3)
    params = {}

    # nn.Linear(16, 32) -- the only layer the reference forward reaches validly.
    w, b = lin(k0, N_OUT, K_IN)
    params["layers_w"] = w                    # (32, 16): returned by `x = self.layers.weight`
    params["layers_b"] = b                    # (32,)
    # Block-diagonal packing: 8 copies of W^T on the diagonal -> (128, 256).
    params["layers_w_bd"] = jnp.kron(jnp.eye(PACK, dtype=w.dtype), w.T)
    params["layers_b_tiled"] = jnp.tile(b, PACK).reshape(1, NP)  # (1, 256)

    # Declared-but-unreachable layers (kept for parameter parity with __init__).
    params["linear1_w"], params["linear1_b"] = lin(k1, 48, 32)   # nn.Linear(32, 48)
    params["linear2_w"], params["linear2_b"] = lin(k2, 16, 48)   # nn.Linear(48, 16)
    # TODO(synk): conv / convtranspose / gru / lstm / rnn / transformer parameters are
    # declared in the reference __init__ but the forward never reaches them with
    # valid shapes, so they are not materialized here.
    return params


def model_forward(params, x, *, force_pallas=False):
    # step 1: x = self.layers(x)  (Linear 16 -> 32).
    lead = x.shape[:-1]
    x2d = x.reshape(-1, x.shape[-1])
    layers_out = linear_layers(params, x2d, force_pallas=force_pallas)
    layers_out = layers_out.reshape(*lead, N_OUT)

    # step 2: x = self.layers.weight  -> the constant (32, 16) parameter tensor.
    x_per_reference = params["layers_w"]

    # TODO(synk): the reference forward next applies self.linear1 (in_features=32) to
    # this (32, 16) tensor and then conv/convtranspose/gru/lstm/rnn/transformer to
    # rank/shape-incompatible values; every op past this point raises a shape error
    # in PyTorch itself, so it cannot be reproduced without inventing semantics.
    return layers_out, x_per_reference


if __name__ == "__main__":
    key = jax.random.PRNGKey(0)
    kp, kx, kb = jax.random.split(key, 3)
    params = init_params(kp)

    # (batch=2, seq=8, features=16): last dim matches nn.Linear(16, 32).
    x = jax.random.normal(kx, (2, 8, 16), dtype=jnp.float32)

    # 1) Module-implied small shape, forced through the Pallas kernel
    #    (single grid step, packed (2,128) @ (128,256)).
    layers_out, x_final = model_forward(params, x, force_pallas=True)
    jax.block_until_ready(layers_out)
    jax.block_until_ready(x_final)
    ref_small = x.reshape(-1, K_IN) @ params["layers_w"].T + params["layers_b"]
    assert jnp.allclose(layers_out.reshape(-1, N_OUT), ref_small, atol=1e-5), \
        "Pallas (forced, small M) mismatch vs reference"
    assert x_final.shape == (N_OUT, K_IN)

    # 2) Default small-M path: XLA fallback (Pallas would be pure launch overhead).
    layers_out_xla, _ = model_forward(params, x)
    jax.block_until_ready(layers_out_xla)
    assert jnp.allclose(layers_out_xla, layers_out, atol=1e-5), \
        "XLA fallback mismatch vs Pallas path"

    # 3) Large-M path: automatic Pallas, multi-step "parallel" grid
    #    (4096 rows -> 512 packed rows -> 4 grid steps of 128 packed rows).
    x_big = jax.random.normal(kb, (4096, K_IN), dtype=jnp.float32)
    y_big, _ = model_forward(params, x_big)
    jax.block_until_ready(y_big)
    ref_big = x_big @ params["layers_w"].T + params["layers_b"]
    assert jnp.allclose(y_big, ref_big, atol=1e-5), \
        "Pallas (large M, tiled grid) mismatch vs reference"

    print("KERNEL_OK")
</pallas_src>

<mosaic_0001>
module attributes {stable_mosaic.version = 11 : i64} {
  func.func @_packed_linear_kernel(%arg0: i32, %arg1: memref<2x128xf32, #tpu.memory_space<vmem>>, %arg2: memref<128x256xf32, #tpu.memory_space<vmem>>, %arg3: memref<1x256xf32, #tpu.memory_space<vmem>>, %arg4: memref<2x256xf32, #tpu.memory_space<vmem>>) attributes {dimension_semantics = [#tpu.dimension_semantics<parallel>], iteration_bounds = array<i64: 1>, scalar_prefetch = 0 : i64, scratch_operands = 0 : i64, tpu.core_type = #tpu.core_type<tc>, window_params = [{transform_indices = @transform_0, window_bounds = array<i64: 2, 128>}, {pipeline_mode = #tpu.pipeline_mode<synchronous>, transform_indices = @transform_1, window_bounds = array<i64: 128, 256>}, {pipeline_mode = #tpu.pipeline_mode<synchronous>, transform_indices = @transform_2, window_bounds = array<i64: 1, 256>}, {transform_indices = @transform_3, window_bounds = array<i64: 2, 256>}]} {
    %c0 = arith.constant 0 : index
    %c0_0 = arith.constant 0 : index
    %0 = vector.load %arg1[%c0, %c0_0] : memref<2x128xf32, #tpu.memory_space<vmem>>, vector<2x128xf32>
    %c0_1 = arith.constant 0 : index
    %c0_2 = arith.constant 0 : index
    %1 = vector.load %arg2[%c0_1, %c0_2] : memref<128x256xf32, #tpu.memory_space<vmem>>, vector<128x256xf32>
    %cst = arith.constant dense<0.000000e+00> : vector<2x256xf32>
    %2 = tpu.matmul %0, %1, %cst {dimension_numbers = #tpu.dot_dimension_numbers<[1], [0], [0], [1], [0, 0, 1, 1], [], []>} : vector<2x128xf32>, vector<128x256xf32>, vector<2x256xf32> -> vector<2x256xf32>
    %c0_3 = arith.constant 0 : index
    %c0_4 = arith.constant 0 : index
    %3 = vector.load %arg3[%c0_3, %c0_4] : memref<1x256xf32, #tpu.memory_space<vmem>>, vector<1x256xf32>
    %4 = vector.broadcast %3 : vector<1x256xf32> to vector<2x256xf32>
    %5 = arith.addf %2, %4 : vector<2x256xf32>
    %c0_5 = arith.constant 0 : index
    %c0_6 = arith.constant 0 : index
    %6 = vector.load %arg4[%c0_5, %c0_6] : memref<2x256xf32, #tpu.memory_space<vmem>>, vector<2x256xf32>
    tpu.vector_store %arg4[%c0_5, %c0_6], %5 {strides = array<i32>} : memref<2x256xf32, #tpu.memory_space<vmem>>, vector<2x256xf32>,
    return
  }
  func.func @transform_0(%arg0: i32) -> (i32, i32) {
    %c0_i32 = arith.constant 0 : i32
    %c0_i32_0 = arith.constant 0 : i32
    return %arg0, %c0_i32 : i32, i32
  }
  func.func @transform_1(%arg0: i32) -> (i32, i32) {
    %c0_i32 = arith.constant 0 : i32
    %c0_i32_0 = arith.constant 0 : i32
    %c0_i32_1 = arith.constant 0 : i32
    return %c0_i32, %c0_i32_0 : i32, i32
  }
  func.func @transform_2(%arg0: i32) -> (i32, i32) {
    %c0_i32 = arith.constant 0 : i32
    %c0_i32_0 = arith.constant 0 : i32
    %c0_i32_1 = arith.constant 0 : i32
    return %c0_i32, %c0_i32_0 : i32, i32
  }
  func.func @transform_3(%arg0: i32) -> (i32, i32) {
    %c0_i32 = arith.constant 0 : i32
    %c0_i32_0 = arith.constant 0 : i32
    return %arg0, %c0_i32 : i32, i32
  }
}

module attributes {stable_mosaic.version = 11 : i64} {
  func.func @_packed_linear_kernel(%arg0: i32, %arg1: memref<2x128xf32, #tpu.memory_space<vmem>>, %arg2: memref<128x256xf32, #tpu.memory_space<vmem>>, %arg3: memref<1x256xf32, #tpu.memory_space<vmem>>, %arg4: memref<2x256xf32, #tpu.memory_space<vmem>>) attributes {dimension_semantics = [#tpu.dimension_semantics<parallel>], iteration_bounds = array<i64: 1>, scalar_prefetch = 0 : i64, scratch_operands = 0 : i64, tpu.core_type = #tpu.core_type<tc>, window_params = [{transform_indices = @transform_0, window_bounds = array<i64: 2, 128>}, {pipeline_mode = #tpu.pipeline_mode<synchronous>, transform_indices = @transform_1, window_bounds = array<i64: 128, 256>}, {pipeline_mode = #tpu.pipeline_mode<synchronous>, transform_indices = @transform_2, window_bounds = array<i64: 1, 256>}, {transform_indices = @transform_3, window_bounds = array<i64: 2, 256>}]} {
    %c0 = arith.constant 0 : index
    %c0_0 = arith.constant 0 : index
    %0 = vector.load %arg1[%c0, %c0_0] : memref<2x128xf32, #tpu.memory_space<vmem>>, vector<2x128xf32>
    %c0_1 = arith.constant 0 : index
    %c0_2 = arith.constant 0 : index
    %1 = vector.load %arg2[%c0_1, %c0_2] : memref<128x256xf32, #tpu.memory_space<vmem>>, vector<128x256xf32>
    %cst = arith.constant dense<0.000000e+00> : vector<2x256xf32>
    %2 = tpu.matmul %0, %1, %cst {dimension_numbers = #tpu.dot_dimension_numbers<[1], [0], [0], [1], [0, 0, 1, 1], [], []>} : vector<2x128xf32>, vector<128x256xf32>, vector<2x256xf32> -> vector<2x256xf32>
    %c0_3 = arith.constant 0 : index
    %c0_4 = arith.constant 0 : index
    %3 = vector.load %arg3[%c0_3, %c0_4] : memref<1x256xf32, #tpu.memory_space<vmem>>, vector<1x256xf32>
    %4 = vector.broadcast %3 : vector<1x256xf32> to vector<2x256xf32>
    %5 = arith.addf %2, %4 : vector<2x256xf32>
    %c0_5 = arith.constant 0 : index
    %c0_6 = arith.constant 0 : index
    %6 = vector.load %arg4[%c0_5, %c0_6] : memref<2x256xf32, #tpu.memory_space<vmem>>, vector<2x256xf32>
    tpu.vector_store %arg4[%c0_5, %c0_6], %5 {strides = array<i32>} : memref<2x256xf32, #tpu.memory_space<vmem>>, vector<2x256xf32>,
    return
  }
  func.func @transform_0(%arg0: i32) -> (i32, i32) {
    %c0_i32 = arith.constant 0 : i32
    %c0_i32_0 = arith.constant 0 : i32
    return %arg0, %c0_i32 : i32, i32
  }
  func.func @transform_1(%arg0: i32) -> (i32, i32) {
    %c0_i32 = arith.constant 0 : i32
    %c0_i32_0 = arith.constant 0 : i32
    %c0_i32_1 = arith.constant 0 : i32
    return %c0_i32, %c0_i32_0 : i32, i32
  }
  func.func @transform_2(%arg0: i32) -> (i32, i32) {
    %c0_i32 = arith.constant 0 : i32
    %c0_i32_0 = arith.constant 0 : i32
    %c0_i32_1 = arith.constant 0 : i32
    return %c0_i32, %c0_i32_0 : i32, i32
  }
  func.func @transform_3(%arg0: i32) -> (i32, i32) {
    %c0_i32 = arith.constant 0 : i32
    %c0_i32_0 = arith.constant 0 : i32
    return %arg0, %c0_i32 : i32, i32
  }
}

</mosaic_0001>

<llo_original>
// kernel: tpu_custom_call.1
$region0: #{tpu_custom_call.1}
  #allocation0 [shape = 'u32[]', space=smem, size = 0x4, offset = 0x4, fixed_abs, tag = 'smem constant byte address 0x4 - core index']
  #allocation1 [shape = 'u32[72,128]{1,0:T(1,128)}', space=vmem, size = 0x9000, scoped, tag = 'internal scratch']
  %s0 = inlined_call_operand.hbm [shape: f32[2,128], index: 0, kind: input, shape index: {}]
  %s1 = inlined_call_operand.hbm [shape: f32[128,256], index: 1, kind: input, shape index: {}]
  %s2 = inlined_call_operand.hbm [shape: f32[1,256], index: 2, kind: input, shape index: {}]
  %s3 = inlined_call_operand.hbm [shape: f32[2,256], index: 3, kind: output, shape index: {}]
  %s4 = sld [smem:[#allocation0]]
  $region34: #{tpu_custom_call.1} parent=0
    _
  %s6 = ssub.s32 1, %s4
  %s7 = scalar_select 0, %s6, %s4
  $region1: #{tpu_custom_call.1} parent=0
    #allocation2 [shape = 'u8[1024]{0}', space=vmem, size = 0x400, scoped, tag = 'input window, operand 0, single buffered']
    #allocation3 [shape = 's32[1]{0}', space=sflag, size = 0x4, scoped, tag = 'scoped memory for tpu_custom_call.1']
    #allocation4 [shape = 's32[1]{0}', space=sflag, size = 0x4, scoped, tag = 'scoped memory for tpu_custom_call.1']
    #allocation5 [shape = 'u8[131072]{0}', space=vmem, size = 0x20000, scoped, tag = 'input window, operand 1, single buffered']
    #allocation6 [shape = 's32[1]{0}', space=sflag, size = 0x4, scoped, tag = 'scoped memory for tpu_custom_call.1']
    #allocation7 [shape = 'u8[1024]{0}', space=vmem, size = 0x400, scoped, tag = 'input window, operand 2, single buffered']
    #allocation8 [shape = 'u8[2048]{0}', space=vmem, size = 0x800, scoped, tag = 'output window, operand 0, single buffered']
    %8 = vsyncpa [#allocation3], 0
    %9 = vsyncpa [#allocation6], 0
    %10 = vsyncpa [#allocation4], 0
    // Predicated region
    $region2: #{tpu_custom_call.1} parent=1 // pred_check
      _
    $region3: #{tpu_custom_call.1} parent=1 // pred_check_branch
      %12 = sbr.rel (0) target = $region5
    $region4: #{tpu_custom_call.1} parent=1 // pred_region
      %14 = vsyncadd [#allocation3], 0
      %s16 = sshll.u32 %s0, 4
      %s17 = int_to_ptr.hbm [resolvable:$true] %s16
      %s18 = sshll.u32 [#allocation2], 4
      %s19 = int_to_ptr.vmem [resolvable:$true] %s18
      %21 = dma.hbm_to_vmem [thread:$0]  %s17, 32, %s19, [#allocation3]
    $region5: #{tpu_custom_call.1} parent=1 // pred_fallthru
      _
    // Predicated region
    $region6: #{tpu_custom_call.1} parent=1 // pred_check
      _
    $region7: #{tpu_custom_call.1} parent=1 // pred_check_branch
      %23 = sbr.rel (0) target = $region9
    $region8: #{tpu_custom_call.1} parent=1 // pred_region
      %25 = vsyncadd [#allocation6], 0
      %s26 = sshll.u32 %s1, 4
      %s27 = int_to_ptr.hbm [resolvable:$true] %s26
      %s28 = sshll.u32 [#allocation5], 4
      %s29 = int_to_ptr.vmem [resolvable:$true] %s28
      %34 = dma.hbm_to_vmem [thread:$0]  %s27, 4096, %s29, [#allocation6], 256, 256, 16
    $region9: #{tpu_custom_call.1} parent=1 // pred_fallthru
      _
    // Predicated region
    $region10: #{tpu_custom_call.1} parent=1 // pred_check
      _
    $region11: #{tpu_custom_call.1} parent=1 // pred_check_branch
      %36 = sbr.rel (0) target = $region13
    $region12: #{tpu_custom_call.1} parent=1 // pred_region
      %38 = vsyncadd [#allocation6], 0
      %s40 = sshll.u32 %s2, 4
      %s41 = int_to_ptr.hbm [resolvable:$true] %s40
      %s42 = sshll.u32 [#allocation7], 4
      %s43 = int_to_ptr.vmem [resolvable:$true] %s42
      %45 = dma.hbm_to_vmem [thread:$0]  %s41, 32, %s43, [#allocation6]
    $region13: #{tpu_custom_call.1} parent=1 // pred_fallthru
      _
    // Predicated region
    $region14: #{tpu_custom_call.1} parent=1 // pred_check
      _
    $region15: #{tpu_custom_call.1} parent=1 // pred_check_branch
      %47 = sbr.rel (0) target = $region17
    $region16: #{tpu_custom_call.1} parent=1 // pred_region
      %49 = dma.done [#allocation3], 32
    $region17: #{tpu_custom_call.1} parent=1 // pred_fallthru
      _
    // Predicated region
    $region18: #{tpu_custom_call.1} parent=1 // pred_check
      _
    $region19: #{tpu_custom_call.1} parent=1 // pred_check_branch
      %51 = sbr.rel (0) target = $region21
    $region20: #{tpu_custom_call.1} parent=1 // pred_region
      %53 = dma.done [#allocation6], 4096
    $region21: #{tpu_custom_call.1} parent=1 // pred_fallthru
      _
    // Predicated region
    $region22: #{tpu_custom_call.1} parent=1 // pred_check
      _
    $region23: #{tpu_custom_call.1} parent=1 // pred_check_branch
      %55 = sbr.rel (0) target = $region25
    $region24: #{tpu_custom_call.1} parent=1 // pred_region
      %57 = dma.done [#allocation6], 32
    $region25: #{tpu_custom_call.1} parent=1 // pred_fallthru
      _
    %v58 = vld [vmem:[#allocation2] sm:$0x3]
    %v59 = vld [vmem:[#allocation5] sm:$0xff]
    %v60 = vld [vmem:[#allocation5 + $0x8] sm:$0xff]
    %v61 = vld [vmem:[#allocation5 + $0x10] sm:$0xff]
    %v62 = vld [vmem:[#allocation5 + $0x18] sm:$0xff]
    %v63 = vld [vmem:[#allocation5 + $0x20] sm:$0xff]
    %v64 = vld [vmem:[#allocation5 + $0x28] sm:$0xff]
    %v65 = vld [vmem:[#allocation5 + $0x30] sm:$0xff]
    %v66 = vld [vmem:[#allocation5 + $0x38] sm:$0xff]
    %v67 = vld [vmem:[#allocation5 + $0x40] sm:$0xff]
    %v68 = vld [vmem:[#allocation5 + $0x48] sm:$0xff]
    %v69 = vld [vmem:[#allocation5 + $0x50] sm:$0xff]
    %v70 = vld [vmem:[#allocation5 + $0x58] sm:$0xff]
    %v71 = vld [vmem:[#allocation5 + $0x60] sm:$0xff]
    %v72 = vld [vmem:[#allocation5 + $0x68] sm:$0xff]
    %v73 = vld [vmem:[#allocation5 + $0x70] sm:$0xff]
    %v74 = vld [vmem:[#allocation5 + $0x78] sm:$0xff]
    %v75 = vld [vmem:[#allocation5 + $0x80] sm:$0xff]
    %v76 = vld [vmem:[#allocation5 + $0x88] sm:$0xff]
    %v77 = vld [vmem:[#allocation5 + $0x90] sm:$0xff]
    %v78 = vld [vmem:[#allocation5 + $0x98] sm:$0xff]
    %v79 = vld [vmem:[#allocation5 + $0xa0] sm:$0xff]
    %v80 = vld [vmem:[#allocation5 + $0xa8] sm:$0xff]
    %v81 = vld [vmem:[#allocation5 + $0xb0] sm:$0xff]
    %v82 = vld [vmem:[#allocation5 + $0xb8] sm:$0xff]
    %v83 = vld [vmem:[#allocation5 + $0xc0] sm:$0xff]
    %v84 = vld [vmem:[#allocation5 + $0xc8] sm:$0xff]
    %v85 = vld [vmem:[#allocation5 + $0xd0] sm:$0xff]
    %v86 = vld [vmem:[#allocation5 + $0xd8] sm:$0xff]
    %v87 = vld [vmem:[#allocation5 + $0xe0] sm:$0xff]
    %v88 = vld [vmem:[#allocation5 + $0xe8] sm:$0xff]
    %v89 = vld [vmem:[#allocation5 + $0xf0] sm:$0xff]
    %v90 = vld [vmem:[#allocation5 + $0xf8] sm:$0xff]
    %v91 = vld [vmem:[#allocation7] sm:$0x3]
    %v93 = vperm.slane %v91, 0
    %v94 = vperm.slane %v91, 1
    %97 = vmatpush.msra.mxu0 %v89
    %98 = vmatpush.msra.mxu0 %v87
    %99 = vmatpush.msra.mxu0 %v85
    %100 = vmatpush.msra.mxu0 %v83
    %101 = vmatpush.msra.mxu0 %v81
    %102 = vmatpush.msra.mxu0 %v79
    %103 = vmatpush.msra.mxu0 %v77
    %104 = vmatpush.msra.mxu0 %v75
    %105 = vmatpush.msra.mxu0 %v73
    %106 = vmatpush.msra.mxu0 %v71
    %107 = vmatpush.msra.mxu0 %v69
    %108 = vmatpush.msra.mxu0 %v67
    %109 = vmatpush.msra.mxu0 %v65
    %110 = vmatpush.msra.mxu0 %v63
    %111 = vmatpush.msra.mxu0 %v61
    %112 = vmatpush.msra.mxu0 %v59
    %113 = vmatmul.f32.gmra.mxu0 %v58
    %v114 = vpop.f32.mrf.mxu0
    %v115 = vadd.f32 %v93, %v114
    %116 = vdwg.mxu0
    %117 = vmatpush.msra.mxu0 %v90
    %118 = vmatpush.msra.mxu0 %v88
    %119 = vmatpush.msra.mxu0 %v86
    %120 = vmatpush.msra.mxu0 %v84
    %121 = vmatpush.msra.mxu0 %v82
    %122 = vmatpush.msra.mxu0 %v80
    %123 = vmatpush.msra.mxu0 %v78
    %124 = vmatpush.msra.mxu0 %v76
    %125 = vmatpush.msra.mxu0 %v74
    %126 = vmatpush.msra.mxu0 %v72
    %127 = vmatpush.msra.mxu0 %v70
    %128 = vmatpush.msra.mxu0 %v68
    %129 = vmatpush.msra.mxu0 %v66
    %130 = vmatpush.msra.mxu0 %v64
    %131 = vmatpush.msra.mxu0 %v62
    %132 = vmatpush.msra.mxu0 %v60
    %133 = vmatmul.f32.gmra.mxu0 %v58
    %v134 = vpop.f32.mrf.mxu0
    %v135 = vadd.f32 %v94, %v134
    %136 = vdwg.mxu0
    %v139 = vrot.slane %v135, 6
    %vm140 = vcmask 1041408
    %v141 = vsel %vm140, %v115, %v139
    %143 = vst [vmem:[#allocation8] sm:$0xf] %v141
    // Predicated region
    $region26: #{tpu_custom_call.1} parent=1 // pred_check
      _
    $region27: #{tpu_custom_call.1} parent=1 // pred_check_branch
      %145 = sbr.rel (0) target = $region29
    $region28: #{tpu_custom_call.1} parent=1 // pred_region
      %147 = vsyncadd [#allocation4], 0
      %s149 = sshll.u32 [#allocation8], 4
      %s150 = int_to_ptr.vmem [resolvable:$true] %s149
      %s151 = sshll.u32 %s3, 4
      %s152 = int_to_ptr.hbm [resolvable:$true] %s151
      %154 = dma.vmem_to_hbm [thread:$0]  %s150, 64, %s152, [#allocation4]
    $region29: #{tpu_custom_call.1} parent=1 // pred_fallthru
      _
    // Predicated region
    $region30: #{tpu_custom_call.1} parent=1 // pred_check
      _
    $region31: #{tpu_custom_call.1} parent=1 // pred_check_branch
      %156 = sbr.rel (0) target = $region33
    $region32: #{tpu_custom_call.1} parent=1 // pred_region
      %158 = dma.done [#allocation4], 64
    $region33: #{tpu_custom_call.1} parent=1 // pred_fallthru
      _
    %159 = vsyncpa [#allocation3], 1
    %160 = vsyncpa [#allocation6], 1
    %161 = vsyncpa [#allocation4], 1

// kernel: tpu_custom_call.1
$region0: #{tpu_custom_call.1}
  #allocation0 [shape = 'u32[]', space=smem, size = 0x4, offset = 0x4, fixed_abs, tag = 'smem constant byte address 0x4 - core index']
  #allocation1 [shape = 'u32[72,128]{1,0:T(1,128)}', space=vmem, size = 0x9000, scoped, tag = 'internal scratch']
  %s0 = inlined_call_operand.hbm [shape: f32[2,128], index: 0, kind: input, shape index: {}]
  %s1 = inlined_call_operand.hbm [shape: f32[128,256], index: 1, kind: input, shape index: {}]
  %s2 = inlined_call_operand.hbm [shape: f32[1,256], index: 2, kind: input, shape index: {}]
  %s3 = inlined_call_operand.hbm [shape: f32[2,256], index: 3, kind: output, shape index: {}]
  %s4 = sld [smem:[#allocation0]]
  $region34: #{tpu_custom_call.1} parent=0
    _
  %s6 = ssub.s32 1, %s4
  %s7 = scalar_select 0, %s6, %s4
  $region1: #{tpu_custom_call.1} parent=0
    #allocation2 [shape = 'u8[1024]{0}', space=vmem, size = 0x400, scoped, tag = 'input window, operand 0, single buffered']
    #allocation3 [shape = 's32[1]{0}', space=sflag, size = 0x4, scoped, tag = 'scoped memory for tpu_custom_call.1']
    #allocation4 [shape = 's32[1]{0}', space=sflag, size = 0x4, scoped, tag = 'scoped memory for tpu_custom_call.1']
    #allocation5 [shape = 'u8[131072]{0}', space=vmem, size = 0x20000, scoped, tag = 'input window, operand 1, single buffered']
    #allocation6 [shape = 's32[1]{0}', space=sflag, size = 0x4, scoped, tag = 'scoped memory for tpu_custom_call.1']
    #allocation7 [shape = 'u8[1024]{0}', space=vmem, size = 0x400, scoped, tag = 'input window, operand 2, single buffered']
    #allocation8 [shape = 'u8[2048]{0}', space=vmem, size = 0x800, scoped, tag = 'output window, operand 0, single buffered']
    %8 = vsyncpa [#allocation3], 0
    %9 = vsyncpa [#allocation6], 0
    %10 = vsyncpa [#allocation4], 0
    // Predicated region
    $region2: #{tpu_custom_call.1} parent=1 // pred_check
      _
    $region3: #{tpu_custom_call.1} parent=1 // pred_check_branch
      %12 = sbr.rel (0) target = $region5
    $region4: #{tpu_custom_call.1} parent=1 // pred_region
      %14 = vsyncadd [#allocation3], 0
      %s16 = sshll.u32 %s0, 4
      %s17 = int_to_ptr.hbm [resolvable:$true] %s16
      %s18 = sshll.u32 [#allocation2], 4
      %s19 = int_to_ptr.vmem [resolvable:$true] %s18
      %21 = dma.hbm_to_vmem [thread:$0]  %s17, 32, %s19, [#allocation3]
    $region5: #{tpu_custom_call.1} parent=1 // pred_fallthru
      _
    // Predicated region
    $region6: #{tpu_custom_call.1} parent=1 // pred_check
      _
    $region7: #{tpu_custom_call.1} parent=1 // pred_check_branch
      %23 = sbr.rel (0) target = $region9
    $region8: #{tpu_custom_call.1} parent=1 // pred_region
      %25 = vsyncadd [#allocation6], 0
      %s26 = sshll.u32 %s1, 4
      %s27 = int_to_ptr.hbm [resolvable:$true] %s26
      %s28 = sshll.u32 [#allocation5], 4
      %s29 = int_to_ptr.vmem [resolvable:$true] %s28
      %34 = dma.hbm_to_vmem [thread:$0]  %s27, 4096, %s29, [#allocation6], 256, 256, 16
    $region9: #{tpu_custom_call.1} parent=1 // pred_fallthru
      _
    // Predicated region
    $region10: #{tpu_custom_call.1} parent=1 // pred_check
      _
    $region11: #{tpu_custom_call.1} parent=1 // pred_check_branch
      %36 = sbr.rel (0) target = $region13
    $region12: #{tpu_custom_call.1} parent=1 // pred_region
      %38 = vsyncadd [#allocation6], 0
      %s40 = sshll.u32 %s2, 4
      %s41 = int_to_ptr.hbm [resolvable:$true] %s40
      %s42 = sshll.u32 [#allocation7], 4
      %s43 = int_to_ptr.vmem [resolvable:$true] %s42
      %45 = dma.hbm_to_vmem [thread:$0]  %s41, 32, %s43, [#allocation6]
    $region13: #{tpu_custom_call.1} parent=1 // pred_fallthru
      _
    // Predicated region
    $region14: #{tpu_custom_call.1} parent=1 // pred_check
      _
    $region15: #{tpu_custom_call.1} parent=1 // pred_check_branch
      %47 = sbr.rel (0) target = $region17
    $region16: #{tpu_custom_call.1} parent=1 // pred_region
      %49 = dma.done [#allocation3], 32
    $region17: #{tpu_custom_call.1} parent=1 // pred_fallthru
      _
    // Predicated region
    $region18: #{tpu_custom_call.1} parent=1 // pred_check
      _
    $region19: #{tpu_custom_call.1} parent=1 // pred_check_branch
      %51 = sbr.rel (0) target = $region21
    $region20: #{tpu_custom_call.1} parent=1 // pred_region
      %53 = dma.done [#allocation6], 4096
    $region21: #{tpu_custom_call.1} parent=1 // pred_fallthru
      _
    // Predicated region
    $region22: #{tpu_custom_call.1} parent=1 // pred_check
      _
    $region23: #{tpu_custom_call.1} parent=1 // pred_check_branch
      %55 = sbr.rel (0) target = $region25
    $region24: #{tpu_custom_call.1} parent=1 // pred_region
      %57 = dma.done [#allocation6], 32
    $region25: #{tpu_custom_call.1} parent=1 // pred_fallthru
      _
    %v58 = vld [vmem:[#allocation2] sm:$0x3]
    %v59 = vld [vmem:[#allocation5] sm:$0xff]
    %v60 = vld [vmem:[#allocation5 + $0x8] sm:$0xff]
    %v61 = vld [vmem:[#allocation5 + $0x10] sm:$0xff]
    %v62 = vld [vmem:[#allocation5 + $0x18] sm:$0xff]
    %v63 = vld [vmem:[#allocation5 + $0x20] sm:$0xff]
    %v64 = vld [vmem:[#allocation5 + $0x28] sm:$0xff]
    %v65 = vld [vmem:[#allocation5 + $0x30] sm:$0xff]
    %v66 = vld [vmem:[#allocation5 + $0x38] sm:$0xff]
    %v67 = vld [vmem:[#allocation5 + $0x40] sm:$0xff]
    %v68 = vld [vmem:[#allocation5 + $0x48] sm:$0xff]
    %v69 = vld [vmem:[#allocation5 + $0x50] sm:$0xff]
    %v70 = vld [vmem:[#allocation5 + $0x58] sm:$0xff]
    %v71 = vld [vmem:[#allocation5 + $0x60] sm:$0xff]
    %v72 = vld [vmem:[#allocation5 + $0x68] sm:$0xff]
    %v73 = vld [vmem:[#allocation5 + $0x70] sm:$0xff]
    %v74 = vld [vmem:[#allocation5 + $0x78] sm:$0xff]
    %v75 = vld [vmem:[#allocation5 + $0x80] sm:$0xff]
    %v76 = vld [vmem:[#allocation5 + $0x88] sm:$0xff]
    %v77 = vld [vmem:[#allocation5 + $0x90] sm:$0xff]
    %v78 = vld [vmem:[#allocation5 + $0x98] sm:$0xff]
    %v79 = vld [vmem:[#allocation5 + $0xa0] sm:$0xff]
    %v80 = vld [vmem:[#allocation5 + $0xa8] sm:$0xff]
    %v81 = vld [vmem:[#allocation5 + $0xb0] sm:$0xff]
    %v82 = vld [vmem:[#allocation5 + $0xb8] sm:$0xff]
    %v83 = vld [vmem:[#allocation5 + $0xc0] sm:$0xff]
    %v84 = vld [vmem:[#allocation5 + $0xc8] sm:$0xff]
    %v85 = vld [vmem:[#allocation5 + $0xd0] sm:$0xff]
    %v86 = vld [vmem:[#allocation5 + $0xd8] sm:$0xff]
    %v87 = vld [vmem:[#allocation5 + $0xe0] sm:$0xff]
    %v88 = vld [vmem:[#allocation5 + $0xe8] sm:$0xff]
    %v89 = vld [vmem:[#allocation5 + $0xf0] sm:$0xff]
    %v90 = vld [vmem:[#allocation5 + $0xf8] sm:$0xff]
    %v91 = vld [vmem:[#allocation7] sm:$0x3]
    %v93 = vperm.slane %v91, 0
    %v94 = vperm.slane %v91, 1
    %97 = vmatpush.msra.mxu0 %v89
    %98 = vmatpush.msra.mxu0 %v87
    %99 = vmatpush.msra.mxu0 %v85
    %100 = vmatpush.msra.mxu0 %v83
    %101 = vmatpush.msra.mxu0 %v81
    %102 = vmatpush.msra.mxu0 %v79
    %103 = vmatpush.msra.mxu0 %v77
    %104 = vmatpush.msra.mxu0 %v75
    %105 = vmatpush.msra.mxu0 %v73
    %106 = vmatpush.msra.mxu0 %v71
    %107 = vmatpush.msra.mxu0 %v69
    %108 = vmatpush.msra.mxu0 %v67
    %109 = vmatpush.msra.mxu0 %v65
    %110 = vmatpush.msra.mxu0 %v63
    %111 = vmatpush.msra.mxu0 %v61
    %112 = vmatpush.msra.mxu0 %v59
    %113 = vmatmul.f32.gmra.mxu0 %v58
    %v114 = vpop.f32.mrf.mxu0
    %v115 = vadd.f32 %v93, %v114
    %116 = vdwg.mxu0
    %117 = vmatpush.msra.mxu0 %v90
    %118 = vmatpush.msra.mxu0 %v88
    %119 = vmatpush.msra.mxu0 %v86
    %120 = vmatpush.msra.mxu0 %v84
    %121 = vmatpush.msra.mxu0 %v82
    %122 = vmatpush.msra.mxu0 %v80
    %123 = vmatpush.msra.mxu0 %v78
    %124 = vmatpush.msra.mxu0 %v76
    %125 = vmatpush.msra.mxu0 %v74
    %126 = vmatpush.msra.mxu0 %v72
    %127 = vmatpush.msra.mxu0 %v70
    %128 = vmatpush.msra.mxu0 %v68
    %129 = vmatpush.msra.mxu0 %v66
    %130 = vmatpush.msra.mxu0 %v64
    %131 = vmatpush.msra.mxu0 %v62
    %132 = vmatpush.msra.mxu0 %v60
    %133 = vmatmul.f32.gmra.mxu0 %v58
    %v134 = vpop.f32.mrf.mxu0
    %v135 = vadd.f32 %v94, %v134
    %136 = vdwg.mxu0
    %v139 = vrot.slane %v135, 6
    %vm140 = vcmask 1041408
    %v141 = vsel %vm140, %v115, %v139
    %143 = vst [vmem:[#allocation8] sm:$0xf] %v141
    // Predicated region
    $region26: #{tpu_custom_call.1} parent=1 // pred_check
      _
    $region27: #{tpu_custom_call.1} parent=1 // pred_check_branch
      %145 = sbr.rel (0) target = $region29
    $region28: #{tpu_custom_call.1} parent=1 // pred_region
      %147 = vsyncadd [#allocation4], 0
      %s149 = sshll.u32 [#allocation8], 4
      %s150 = int_to_ptr.vmem [resolvable:$true] %s149
      %s151 = sshll.u32 %s3, 4
      %s152 = int_to_ptr.hbm [resolvable:$true] %s151
      %154 = dma.vmem_to_hbm [thread:$0]  %s150, 64, %s152, [#allocation4]
    $region29: #{tpu_custom_call.1} parent=1 // pred_fallthru
      _
    // Predicated region
    $region30: #{tpu_custom_call.1} parent=1 // pred_check
      _
    $region31: #{tpu_custom_call.1} parent=1 // pred_check_branch
      %156 = sbr.rel (0) target = $region33
    $region32: #{tpu_custom_call.1} parent=1 // pred_region
      %158 = dma.done [#allocation4], 64
    $region33: #{tpu_custom_call.1} parent=1 // pred_fallthru
      _
    %159 = vsyncpa [#allocation3], 1
    %160 = vsyncpa [#allocation6], 1
    %161 = vsyncpa [#allocation4], 1

</llo_original>
